<compile_context>
chip_gen: v5e
topology: v5e:2x2
jax: 0.10.0
libtpu: 0.0.40
codegen_flags: <defaults>
</compile_context>

<pallas_src>
import functools

import jax
import jax.numpy as jnp
from jax import lax
from jax.experimental import pallas as pl
from jax.experimental.pallas import tpu as pltpu

_BN_EPS = 1e-5
_NT = (((1,), (1,)), ((), ()))  # contract last axis of lhs with last axis of rhs
_MIN_SCOPED_VMEM = 16 << 20     # most conservative default scoped VMEM (v5e)


def _fused_residual_block_kernel(x_ref, w1_ref, b1_ref, w2_ref, b2_ref,
                                 gamma_ref, beta_ref, o_ref,
                                 z_ref, stat_ref, *, inv_batch, n_tiles):
    """Fused forward over grid = (phase, batch_tile).

    phase 0        : z = (relu(x@W1^T+b1))@W2^T + b2 + x -> z_ref[i];
                     sum(z) accumulated into stat_ref[0].
    phase 1, tile 0: finalize full-batch mean/var -> stat_ref = [scale, shift].
    phase 1        : out = relu(z * scale + shift) from the VMEM-resident z.

    x_ref  : [TB, D]   w1_ref : [H, D]   b1_ref : [1, H]
    w2_ref : [D, H]    b2_ref : [1, D]   gamma_ref / beta_ref : [1, D]
    o_ref  : [TB, D]
    z_ref  : [n_tiles, TB, D] (operand dtype)   stat_ref : [2, D] f32
    """
    p = pl.program_id(0)
    i = pl.program_id(1)

    @pl.when((p == 0) & (i == 0))
    def _init_stats():
        stat_ref[...] = jnp.zeros_like(stat_ref)

    @pl.when(p == 0)
    def _cross_layer():
        x = x_ref[...]  # native dtype — bf16 operands use the fast MXU path
        h = lax.dot_general(x, w1_ref[...], _NT,
                            preferred_element_type=jnp.float32)
        h = jnp.maximum(h + b1_ref[...].astype(jnp.float32), 0.0)
        # cast back to the weight dtype so bf16 weights keep the single-pass MXU path
        h = h.astype(w2_ref.dtype)
        y = lax.dot_general(h, w2_ref[...], _NT,
                            preferred_element_type=jnp.float32)
        z = y + b2_ref[...].astype(jnp.float32) + x.astype(jnp.float32)
        z_ref[i] = z.astype(z_ref.dtype)
        # Accumulate sum(z) from the f32 (pre-downcast) z — stats keep f32 precision.
        stat_ref[0:1, :] = stat_ref[0:1, :] + jnp.sum(z, axis=0, keepdims=True)

    @pl.when((p == 1) & (i == 0))
    def _finalize_stats():
        d = z_ref.shape[-1]
        mean = stat_ref[0:1, :] * inv_batch

        # Exact two-pass (centered) variance from the VMEM-resident z; avoids the
        # E[z^2] - E[z]^2 cancellation issue. One cheap VMEM pass, tb x D at a time.
        def _tile_ssq(t, acc):
            zc = z_ref[t].astype(jnp.float32) - mean
            return acc + jnp.sum(zc * zc, axis=0, keepdims=True)

        ssq = lax.fori_loop(0, n_tiles, _tile_ssq,
                            jnp.zeros((1, d), jnp.float32))
        var = ssq * inv_batch  # biased (1/N): PyTorch training-mode normalization
        scale = gamma_ref[...].astype(jnp.float32) * lax.rsqrt(var + _BN_EPS)
        shift = beta_ref[...].astype(jnp.float32) - mean * scale
        stat_ref[0:1, :] = scale   # accumulator rows reused as [scale, shift]
        stat_ref[1:2, :] = shift

    @pl.when(p == 1)
    def _bn_relu():
        z = z_ref[i].astype(jnp.float32)
        out = z * stat_ref[0:1, :] + stat_ref[1:2, :]
        o_ref[...] = jnp.maximum(out, 0.0).astype(o_ref.dtype)


def _sublane_align(dtype):
    return {4: 8, 2: 16, 1: 32}.get(jnp.dtype(dtype).itemsize, 8)


def _pick_batch_tile(batch, dtype, cap=2048, min_tiles=4):
    """Batch tile: multiple of the sublane packing for `dtype`, divides `batch`,
    big enough to amortize per-step overhead yet small enough for >= min_tiles
    pipelined grid steps (else the full batch)."""
    align = _sublane_align(dtype)
    if batch <= max(align, 64):
        return batch
    target = min(cap, max(64, batch // min_tiles))
    tb = (target // align) * align
    while tb >= align:
        if batch % tb == 0:
            return tb
        tb -= align
    return batch


def residual_block(x, w1, b1, w2, b2, gamma, beta, *,
                   batch_tile=None, operand_dtype=None):
    """x: [B, D]; w1: [H, D]; b1: [H]; w2: [D, H]; b2: [D]; gamma/beta: [D].

    operand_dtype: optional dtype (e.g. jnp.bfloat16) to which x/W1/W2 are cast
    once for the matmuls (f32 MXU accumulation is kept); the output dtype
    follows the ORIGINAL x dtype.
    """
    B, D = x.shape
    H = w1.shape[0]
    out_dtype = x.dtype

    if operand_dtype is not None:
        x = x.astype(operand_dtype)
        w1 = w1.astype(operand_dtype)
        w2 = w2.astype(operand_dtype)
    op_dtype = x.dtype
    # z scratch narrows with the operands (halves VMEM for bf16), stays f32 for f32.
    z_dtype = op_dtype if jnp.dtype(op_dtype).itemsize < 4 else jnp.float32

    align = _sublane_align(op_dtype)
    tb = batch_tile if batch_tile is not None else _pick_batch_tile(B, op_dtype)
    assert B % tb == 0, "batch tile must divide the batch"
    assert tb == B or tb % align == 0, (
        f"batch tile must be a multiple of {align} rows for {op_dtype} "
        "(or the full batch)")
    n_tiles = B // tb

    # 1-D params lifted to [1, C] rows (tiny, done once per call), kept f32.
    b1r = b1.reshape(1, H).astype(jnp.float32)
    b2r = b2.reshape(1, D).astype(jnp.float32)
    gr = gamma.reshape(1, D).astype(jnp.float32)
    br = beta.reshape(1, D).astype(jnp.float32)

    const2d = lambda shape: pl.BlockSpec(shape, lambda p, i: (0, 0))
    # x is only consumed in phase 0 (its index collapses to tile 0 in phase 1,
    # so nothing is re-DMA'd); the output is only produced in phase 1 (its index
    # stays at tile 0 during phase 0, so no garbage block is ever written back).
    x_spec = pl.BlockSpec((tb, D), lambda p, i: (i * (1 - p), 0))
    out_spec = pl.BlockSpec((tb, D), lambda p, i: (i * p, 0))

    # Explicit VMEM arithmetic: persistent z scratch + double-buffered streams +
    # resident weights. Raise the scoped limit only when actually needed.
    isz = lambda dt: jnp.dtype(dt).itemsize
    vmem_est = (
        B * D * isz(z_dtype)                                    # z scratch
        + 2 * tb * D * (isz(op_dtype) + isz(out_dtype))         # x / out tiles
        + 2 * 2 * H * D * isz(op_dtype)                         # w1, w2 (x2 buf)
        + 2 * 8 * (H + 3 * D) * 4                               # padded 1xC rows
        + 2 * D * 4                                             # stat scratch
        + (1 << 20))                                            # headroom
    cparams_kwargs = dict(dimension_semantics=("arbitrary", "arbitrary"))
    if vmem_est > _MIN_SCOPED_VMEM:
        cparams_kwargs["vmem_limit_bytes"] = int(
            min(max(vmem_est * 3 // 2, 32 << 20), 56 << 20))

    kernel = functools.partial(_fused_residual_block_kernel,
                               inv_batch=1.0 / B, n_tiles=n_tiles)

    return pl.pallas_call(
        kernel,
        out_shape=jax.ShapeDtypeStruct((B, D), out_dtype),
        grid=(2, n_tiles),                # (phase, batch tile)
        in_specs=[
            x_spec,               # x tile
            const2d((H, D)),      # w1 (consumed untransposed, VMEM-resident)
            const2d((1, H)),      # b1
            const2d((D, H)),      # w2 (consumed untransposed, VMEM-resident)
            const2d((1, D)),      # b2
            const2d((1, D)),      # gamma
            const2d((1, D)),      # beta
        ],
        out_specs=out_spec,
        scratch_shapes=[
            pltpu.VMEM((n_tiles, tb, D), z_dtype),   # full-batch z, VMEM-resident
            pltpu.VMEM((2, D), jnp.float32),         # sum(z) -> [scale, shift]
        ],
        compiler_params=pltpu.CompilerParams(**cparams_kwargs),
    )(x, w1, b1r, w2, b2r, gr, br)


def _reference(x, w1, b1, w2, b2, gamma, beta):
    hp = jax.lax.Precision.HIGHEST
    h = jnp.maximum(jnp.dot(x, w1.T, precision=hp) + b1, 0.0)
    z = jnp.dot(h, w2.T, precision=hp) + b2 + x
    mean = jnp.mean(z, axis=0, keepdims=True)
    var = jnp.mean((z - mean) ** 2, axis=0, keepdims=True)
    z = (z - mean) / jnp.sqrt(var + _BN_EPS) * gamma + beta
    return jnp.maximum(z, 0.0)


if __name__ == "__main__":
    # Small but tile-friendly shapes: X is [batch, input_dim]; D=128 keeps the
    # output lane-dense; the auto-picked batch tile (64) gives 4 pipelined tiles.
    batch, input_dim, hidden_dim = 256, 128, 256

    key = jax.random.PRNGKey(0)
    kx, k1, k2, k3, k4 = jax.random.split(key, 5)

    x = jax.random.normal(kx, (batch, input_dim), dtype=jnp.float32)

    # Deterministic parameter init (PyTorch-Linear-style uniform bounds).
    bound1 = 1.0 / (input_dim ** 0.5)
    w1 = jax.random.uniform(k1, (hidden_dim, input_dim), jnp.float32, -bound1, bound1)
    b1 = jax.random.uniform(k2, (hidden_dim,), jnp.float32, -bound1, bound1)
    bound2 = 1.0 / (hidden_dim ** 0.5)
    w2 = jax.random.uniform(k3, (input_dim, hidden_dim), jnp.float32, -bound2, bound2)
    b2 = jax.random.uniform(k4, (input_dim,), jnp.float32, -bound2, bound2)
    gamma = jnp.ones((input_dim,), jnp.float32)   # BatchNorm1d default affine init
    beta = jnp.zeros((input_dim,), jnp.float32)

    ref = _reference(x, w1, b1, w2, b2, gamma, beta)

    # f32 operand path — strict check.
    out = residual_block(x, w1, b1, w2, b2, gamma, beta)
    jax.block_until_ready(out)
    assert out.shape == (batch, input_dim)
    assert jnp.allclose(out, ref, atol=1e-3, rtol=1e-3), "f32 mismatch vs reference"

    # bf16 operand path (fast MXU path on v5e/v6e, required path on v7x) —
    # f32 accumulation + f32 BN stats keep it close; loose tolerance.
    out_bf16 = residual_block(x, w1, b1, w2, b2, gamma, beta,
                              operand_dtype=jnp.bfloat16)
    jax.block_until_ready(out_bf16)
    assert out_bf16.shape == (batch, input_dim) and out_bf16.dtype == x.dtype
    assert jnp.allclose(out_bf16, ref, atol=1e-1, rtol=1e-1), "bf16 mismatch vs reference"

    print("KERNEL_OK")
</pallas_src>

<mosaic_0001>
module attributes {stable_mosaic.version = 11 : i64} {
  func.func @_fused_residual_block_kernel(%arg0: i32, %arg1: i32, %arg2: memref<64x128xf32, #tpu.memory_space<vmem>>, %arg3: memref<256x128xf32, #tpu.memory_space<vmem>>, %arg4: memref<1x256xf32, #tpu.memory_space<vmem>>, %arg5: memref<128x256xf32, #tpu.memory_space<vmem>>, %arg6: memref<1x128xf32, #tpu.memory_space<vmem>>, %arg7: memref<1x128xf32, #tpu.memory_space<vmem>>, %arg8: memref<1x128xf32, #tpu.memory_space<vmem>>, %arg9: memref<64x128xf32, #tpu.memory_space<vmem>>, %arg10: memref<4x64x128xf32, #tpu.memory_space<vmem>>, %arg11: memref<2x128xf32, #tpu.memory_space<vmem>>) attributes {dimension_semantics = [#tpu.dimension_semantics<arbitrary>, #tpu.dimension_semantics<arbitrary>], iteration_bounds = array<i64: 2, 4>, scalar_prefetch = 0 : i64, scratch_operands = 2 : i64, tpu.core_type = #tpu.core_type<tc>, window_params = [{transform_indices = @transform_0, window_bounds = array<i64: 64, 128>}, {pipeline_mode = #tpu.pipeline_mode<synchronous>, transform_indices = @transform_1, window_bounds = array<i64: 256, 128>}, {pipeline_mode = #tpu.pipeline_mode<synchronous>, transform_indices = @transform_2, window_bounds = array<i64: 1, 256>}, {pipeline_mode = #tpu.pipeline_mode<synchronous>, transform_indices = @transform_3, window_bounds = array<i64: 128, 256>}, {pipeline_mode = #tpu.pipeline_mode<synchronous>, transform_indices = @transform_4, window_bounds = array<i64: 1, 128>}, {pipeline_mode = #tpu.pipeline_mode<synchronous>, transform_indices = @transform_5, window_bounds = array<i64: 1, 128>}, {pipeline_mode = #tpu.pipeline_mode<synchronous>, transform_indices = @transform_6, window_bounds = array<i64: 1, 128>}, {transform_indices = @transform_7, window_bounds = array<i64: 64, 128>}]} {
    %c0_i32 = arith.constant 0 : i32
    %0 = arith.cmpi eq, %arg0, %c0_i32 : i32
    %c0_i32_0 = arith.constant 0 : i32
    %1 = arith.cmpi eq, %arg1, %c0_i32_0 : i32
    %2 = arith.andi %0, %1 : i1
    %3 = arith.extui %2 : i1 to i32
    %c0_i32_1 = arith.constant 0 : i32
    %4 = arith.cmpi ne, %3, %c0_i32_1 : i32
    scf.if %4 {
      %cst = arith.constant 0.000000e+00 : f32
      %16 = vector.broadcast %cst : f32 to vector<2x128xf32>
      %c0 = arith.constant 0 : index
      %c0_8 = arith.constant 0 : index
      %17 = vector.load %arg11[%c0, %c0_8] : memref<2x128xf32, #tpu.memory_space<vmem>>, vector<2x128xf32>
      tpu.vector_store %arg11[%c0, %c0_8], %16 {strides = array<i32>} : memref<2x128xf32, #tpu.memory_space<vmem>>, vector<2x128xf32>,
    } else {
    }
    %c0_i32_2 = arith.constant 0 : i32
    %5 = arith.cmpi eq, %arg0, %c0_i32_2 : i32
    %6 = arith.extui %5 : i1 to i32
    %c0_i32_3 = arith.constant 0 : i32
    %7 = arith.cmpi ne, %6, %c0_i32_3 : i32
    scf.if %7 {
      %c0 = arith.constant 0 : index
      %c0_8 = arith.constant 0 : index
      %16 = vector.load %arg2[%c0, %c0_8] : memref<64x128xf32, #tpu.memory_space<vmem>>, vector<64x128xf32>
      %c0_9 = arith.constant 0 : index
      %c0_10 = arith.constant 0 : index
      %17 = vector.load %arg3[%c0_9, %c0_10] : memref<256x128xf32, #tpu.memory_space<vmem>>, vector<256x128xf32>
      %cst = arith.constant dense<0.000000e+00> : vector<64x256xf32>
      %18 = tpu.matmul %16, %17, %cst {dimension_numbers = #tpu.dot_dimension_numbers<[1], [1], [0], [0], [0, 0, 1, 0], [], []>} : vector<64x128xf32>, vector<256x128xf32>, vector<64x256xf32> -> vector<64x256xf32>
      %c0_11 = arith.constant 0 : index
      %c0_12 = arith.constant 0 : index
      %19 = vector.load %arg4[%c0_11, %c0_12] : memref<1x256xf32, #tpu.memory_space<vmem>>, vector<1x256xf32>
      %20 = vector.broadcast %19 : vector<1x256xf32> to vector<64x256xf32>
      %21 = arith.addf %18, %20 : vector<64x256xf32>
      %cst_13 = arith.constant 0.000000e+00 : f32
      %22 = vector.broadcast %cst_13 : f32 to vector<64x256xf32>
      %23 = arith.maximumf %21, %22 : vector<64x256xf32>
      %c0_14 = arith.constant 0 : index
      %c0_15 = arith.constant 0 : index
      %24 = vector.load %arg5[%c0_14, %c0_15] : memref<128x256xf32, #tpu.memory_space<vmem>>, vector<128x256xf32>
      %cst_16 = arith.constant dense<0.000000e+00> : vector<64x128xf32>
      %25 = tpu.matmul %23, %24, %cst_16 {dimension_numbers = #tpu.dot_dimension_numbers<[1], [1], [0], [0], [0, 0, 1, 0], [], []>} : vector<64x256xf32>, vector<128x256xf32>, vector<64x128xf32> -> vector<64x128xf32>
      %c0_17 = arith.constant 0 : index
      %c0_18 = arith.constant 0 : index
      %26 = vector.load %arg6[%c0_17, %c0_18] : memref<1x128xf32, #tpu.memory_space<vmem>>, vector<1x128xf32>
      %27 = vector.broadcast %26 : vector<1x128xf32> to vector<64x128xf32>
      %28 = arith.addf %25, %27 : vector<64x128xf32>
      %29 = arith.addf %28, %16 : vector<64x128xf32>
      %30 = arith.index_cast %arg1 : i32 to index
      %c0_19 = arith.constant 0 : index
      %c0_20 = arith.constant 0 : index
      %31 = vector.load %arg10[%30, %c0_19, %c0_20] : memref<4x64x128xf32, #tpu.memory_space<vmem>>, vector<1x64x128xf32>
      %32 = vector.shape_cast %31 : vector<1x64x128xf32> to vector<64x128xf32>
      %33 = vector.shape_cast %29 : vector<64x128xf32> to vector<1x64x128xf32>
      tpu.vector_store %arg10[%30, %c0_19, %c0_20], %33 {strides = array<i32>} : memref<4x64x128xf32, #tpu.memory_space<vmem>>, vector<1x64x128xf32>,
      %c0_21 = arith.constant 0 : index
      %c0_22 = arith.constant 0 : index
      %34 = vector.load %arg11[%c0_21, %c0_22] : memref<2x128xf32, #tpu.memory_space<vmem>>, vector<1x128xf32>
      %cst_23 = arith.constant dense<0.000000e+00> : vector<128xf32>
      %35 = vector.multi_reduction <add>, %29, %cst_23 [0] : vector<64x128xf32> to vector<128xf32>
      %36 = vector.shape_cast %35 : vector<128xf32> to vector<1x128xf32>
      %37 = arith.addf %34, %36 : vector<1x128xf32>
      %c0_24 = arith.constant 0 : index
      %c0_25 = arith.constant 0 : index
      %38 = vector.load %arg11[%c0_24, %c0_25] : memref<2x128xf32, #tpu.memory_space<vmem>>, vector<1x128xf32>
      tpu.vector_store %arg11[%c0_24, %c0_25], %37 {strides = array<i32>} : memref<2x128xf32, #tpu.memory_space<vmem>>, vector<1x128xf32>,
    } else {
    }
    %c1_i32 = arith.constant 1 : i32
    %8 = arith.cmpi eq, %arg0, %c1_i32 : i32
    %c0_i32_4 = arith.constant 0 : i32
    %9 = arith.cmpi eq, %arg1, %c0_i32_4 : i32
    %10 = arith.andi %8, %9 : i1
    %11 = arith.extui %10 : i1 to i32
    %c0_i32_5 = arith.constant 0 : i32
    %12 = arith.cmpi ne, %11, %c0_i32_5 : i32
    scf.if %12 {
      %c0 = arith.constant 0 : index
      %c0_8 = arith.constant 0 : index
      %16 = vector.load %arg11[%c0, %c0_8] : memref<2x128xf32, #tpu.memory_space<vmem>>, vector<1x128xf32>
      %cst = arith.constant 3.906250e-03 : f32
      %17 = vector.broadcast %cst : f32 to vector<1x128xf32>
      %18 = arith.mulf %16, %17 : vector<1x128xf32>
      %cst_9 = arith.constant 0.000000e+00 : f32
      %19 = vector.broadcast %cst_9 : f32 to vector<1x128xf32>
      %c0_i32_10 = arith.constant 0 : i32
      %c4_i32 = arith.constant 4 : i32
      %20 = arith.addi %c0_i32_10, %c4_i32 : i32
      %c1_i32_11 = arith.constant 1 : i32
      %21 = scf.for %arg12 = %c0_i32_10 to %20 step %c1_i32_11 iter_args(%arg13 = %19) -> (vector<1x128xf32>)  : i32 {
        %34 = arith.index_cast %arg12 : i32 to index
        %c0_22 = arith.constant 0 : index
        %c0_23 = arith.constant 0 : index
        %35 = vector.load %arg10[%34, %c0_22, %c0_23] : memref<4x64x128xf32, #tpu.memory_space<vmem>>, vector<1x64x128xf32>
        %36 = vector.shape_cast %35 : vector<1x64x128xf32> to vector<64x128xf32>
        %37 = vector.broadcast %18 : vector<1x128xf32> to vector<64x128xf32>
        %38 = arith.subf %36, %37 : vector<64x128xf32>
        %39 = arith.mulf %38, %38 : vector<64x128xf32>
        %cst_24 = arith.constant dense<0.000000e+00> : vector<128xf32>
        %40 = vector.multi_reduction <add>, %39, %cst_24 [0] : vector<64x128xf32> to vector<128xf32>
        %41 = vector.shape_cast %40 : vector<128xf32> to vector<1x128xf32>
        %42 = arith.addf %arg13, %41 : vector<1x128xf32>
        scf.yield %42 : vector<1x128xf32>
      }
      %c4_i32_12 = arith.constant 4 : i32
      %cst_13 = arith.constant 3.906250e-03 : f32
      %22 = vector.broadcast %cst_13 : f32 to vector<1x128xf32>
      %23 = arith.mulf %21, %22 : vector<1x128xf32>
      %c0_14 = arith.constant 0 : index
      %c0_15 = arith.constant 0 : index
      %24 = vector.load %arg7[%c0_14, %c0_15] : memref<1x128xf32, #tpu.memory_space<vmem>>, vector<1x128xf32>
      %cst_16 = arith.constant 9.99999974E-6 : f32
      %25 = vector.broadcast %cst_16 : f32 to vector<1x128xf32>
      %26 = arith.addf %23, %25 : vector<1x128xf32>
      %27 = math.rsqrt %26 : vector<1x128xf32>
      %28 = arith.mulf %24, %27 : vector<1x128xf32>
      %c0_17 = arith.constant 0 : index
      %c0_18 = arith.constant 0 : index
      %29 = vector.load %arg8[%c0_17, %c0_18] : memref<1x128xf32, #tpu.memory_space<vmem>>, vector<1x128xf32>
      %30 = arith.mulf %18, %28 : vector<1x128xf32>
      %31 = arith.subf %29, %30 : vector<1x128xf32>
      %c0_19 = arith.constant 0 : index
      %c0_20 = arith.constant 0 : index
      %32 = vector.load %arg11[%c0_19, %c0_20] : memref<2x128xf32, #tpu.memory_space<vmem>>, vector<1x128xf32>
      tpu.vector_store %arg11[%c0_19, %c0_20], %28 {strides = array<i32>} : memref<2x128xf32, #tpu.memory_space<vmem>>, vector<1x128xf32>,
      %c1 = arith.constant 1 : index
      %c0_21 = arith.constant 0 : index
      %33 = vector.load %arg11[%c1, %c0_21] : memref<2x128xf32, #tpu.memory_space<vmem>>, vector<1x128xf32>
      tpu.vector_store %arg11[%c1, %c0_21], %31 {strides = array<i32>} : memref<2x128xf32, #tpu.memory_space<vmem>>, vector<1x128xf32>,
    } else {
    }
    %c1_i32_6 = arith.constant 1 : i32
    %13 = arith.cmpi eq, %arg0, %c1_i32_6 : i32
    %14 = arith.extui %13 : i1 to i32
    %c0_i32_7 = arith.constant 0 : i32
    %15 = arith.cmpi ne, %14, %c0_i32_7 : i32
    scf.if %15 {
      %16 = arith.index_cast %arg1 : i32 to index
      %c0 = arith.constant 0 : index
      %c0_8 = arith.constant 0 : index
      %17 = vector.load %arg10[%16, %c0, %c0_8] : memref<4x64x128xf32, #tpu.memory_space<vmem>>, vector<1x64x128xf32>
      %18 = vector.shape_cast %17 : vector<1x64x128xf32> to vector<64x128xf32>
      %c0_9 = arith.constant 0 : index
      %c0_10 = arith.constant 0 : index
      %19 = vector.load %arg11[%c0_9, %c0_10] : memref<2x128xf32, #tpu.memory_space<vmem>>, vector<1x128xf32>
      %20 = vector.broadcast %19 : vector<1x128xf32> to vector<64x128xf32>
      %21 = arith.mulf %18, %20 : vector<64x128xf32>
      %c1 = arith.constant 1 : index
      %c0_11 = arith.constant 0 : index
      %22 = vector.load %arg11[%c1, %c0_11] : memref<2x128xf32, #tpu.memory_space<vmem>>, vector<1x128xf32>
      %23 = vector.broadcast %22 : vector<1x128xf32> to vector<64x128xf32>
      %24 = arith.addf %21, %23 : vector<64x128xf32>
      %cst = arith.constant 0.000000e+00 : f32
      %25 = vector.broadcast %cst : f32 to vector<64x128xf32>
      %26 = arith.maximumf %24, %25 : vector<64x128xf32>
      %c0_12 = arith.constant 0 : index
      %c0_13 = arith.constant 0 : index
      %27 = vector.load %arg9[%c0_12, %c0_13] : memref<64x128xf32, #tpu.memory_space<vmem>>, vector<64x128xf32>
      tpu.vector_store %arg9[%c0_12, %c0_13], %26 {strides = array<i32>} : memref<64x128xf32, #tpu.memory_space<vmem>>, vector<64x128xf32>,
    } else {
    }
    return
  }
  func.func @transform_0(%arg0: i32, %arg1: i32) -> (i32, i32) {
    %c1_i32 = arith.constant 1 : i32
    %0 = arith.subi %c1_i32, %arg0 : i32
    %1 = arith.muli %arg1, %0 : i32
    %c0_i32 = arith.constant 0 : i32
    %c0_i32_0 = arith.constant 0 : i32
    return %1, %c0_i32 : i32, i32
  }
  func.func @transform_1(%arg0: i32, %arg1: i32) -> (i32, i32) {
    %c0_i32 = arith.constant 0 : i32
    %c0_i32_0 = arith.constant 0 : i32
    %c0_i32_1 = arith.constant 0 : i32
    return %c0_i32, %c0_i32_0 : i32, i32
  }
  func.func @transform_2(%arg0: i32, %arg1: i32) -> (i32, i32) {
    %c0_i32 = arith.constant 0 : i32
    %c0_i32_0 = arith.constant 0 : i32
    %c0_i32_1 = arith.constant 0 : i32
    return %c0_i32, %c0_i32_0 : i32, i32
  }
  func.func @transform_3(%arg0: i32, %arg1: i32) -> (i32, i32) {
    %c0_i32 = arith.constant 0 : i32
    %c0_i32_0 = arith.constant 0 : i32
    %c0_i32_1 = arith.constant 0 : i32
    return %c0_i32, %c0_i32_0 : i32, i32
  }
  func.func @transform_4(%arg0: i32, %arg1: i32) -> (i32, i32) {
    %c0_i32 = arith.constant 0 : i32
    %c0_i32_0 = arith.constant 0 : i32
    %c0_i32_1 = arith.constant 0 : i32
    return %c0_i32, %c0_i32_0 : i32, i32
  }
  func.func @transform_5(%arg0: i32, %arg1: i32) -> (i32, i32) {
    %c0_i32 = arith.constant 0 : i32
    %c0_i32_0 = arith.constant 0 : i32
    %c0_i32_1 = arith.constant 0 : i32
    return %c0_i32, %c0_i32_0 : i32, i32
  }
  func.func @transform_6(%arg0: i32, %arg1: i32) -> (i32, i32) {
    %c0_i32 = arith.constant 0 : i32
    %c0_i32_0 = arith.constant 0 : i32
    %c0_i32_1 = arith.constant 0 : i32
    return %c0_i32, %c0_i32_0 : i32, i32
  }
  func.func @transform_7(%arg0: i32, %arg1: i32) -> (i32, i32) {
    %0 = arith.muli %arg1, %arg0 : i32
    %c0_i32 = arith.constant 0 : i32
    %c0_i32_0 = arith.constant 0 : i32
    return %0, %c0_i32 : i32, i32
  }
}

</mosaic_0001>

<llo_original>
// kernel: tpu_custom_call.1
$region0: #{tpu_custom_call.1}
  #allocation0 [shape = 'u32[]', space=smem, size = 0x4, offset = 0x4, fixed_abs, tag = 'smem constant byte address 0x4 - core index']
  #allocation1 [shape = 'u32[72,128]{1,0:T(1,128)}', space=vmem, size = 0x9000, scoped, tag = 'internal scratch']
  #allocation2 [shape = 'f32[4,64,128]{2,1,0:T(8,128)}', space=vmem, size = 0x20000, scoped, tag = 'scratch operand']
  #allocation3 [shape = 'f32[2,128]{1,0:T(2,128)}', space=vmem, size = 0x400, scoped, tag = 'scratch operand']
  %s0 = inlined_call_operand.hbm [shape: f32[256,128], index: 0, kind: input, shape index: {}]
  %s1 = inlined_call_operand.hbm [shape: f32[256,128], index: 1, kind: input, shape index: {}]
  %s2 = inlined_call_operand.hbm [shape: f32[1,256], index: 2, kind: input, shape index: {}]
  %s3 = inlined_call_operand.hbm [shape: f32[128,256], index: 3, kind: input, shape index: {}]
  %s4 = inlined_call_operand.vmem [shape: f32[1,128], index: 4, kind: input, shape index: {}]
  %s5 = inlined_call_operand.vmem [shape: f32[1,128], index: 5, kind: input, shape index: {}]
  %s6 = inlined_call_operand.vmem [shape: f32[1,128], index: 6, kind: input, shape index: {}]
  %s7 = inlined_call_operand.hbm [shape: f32[256,128], index: 7, kind: output, shape index: {}]
  %s8 = sld [smem:[#allocation0]]
  $region100: #{tpu_custom_call.1} parent=0
    _
  %s10 = ssub.s32 1, %s8
  %s11 = scalar_select 0, %s10, %s8
  $region1: #{tpu_custom_call.1} parent=0
    #allocation4 [shape = 'u8[65536]{0}', space=vmem, size = 0x10000, scoped, tag = 'input window, operand 0']
    #allocation5 [shape = 's32[2]{0}', space=sflag, size = 0x8, scoped, tag = 'scoped memory for tpu_custom_call.1']
    #allocation6 [shape = 's32[2]{0}', space=sflag, size = 0x8, scoped, tag = 'scoped memory for tpu_custom_call.1']
    #allocation7 [shape = 'u8[131072]{0}', space=vmem, size = 0x20000, scoped, tag = 'input window, operand 1, single buffered']
    #allocation8 [shape = 's32[1]{0}', space=sflag, size = 0x4, scoped, tag = 'scoped memory for tpu_custom_call.1']
    #allocation9 [shape = 'u8[1024]{0}', space=vmem, size = 0x400, scoped, tag = 'input window, operand 2, single buffered']
    #allocation10 [shape = 'u8[131072]{0}', space=vmem, size = 0x20000, scoped, tag = 'input window, operand 3, single buffered']
    #allocation11 [shape = 's32[1]{0}', space=sflag, size = 0x4, scoped, tag = 'scoped memory for tpu_custom_call.1']
    #allocation12 [shape = 'u8[65536]{0}', space=vmem, size = 0x10000, scoped, tag = 'output window, operand 0']
    %12 = vsyncpa [#allocation5], 0
    %s13 = scalar_lea.sflag [#allocation5], 1
    %14 = vsyncpa %s13, 0
    %15 = vsyncpa [#allocation8], 0
    %16 = vsyncpa [#allocation11], 0
    %17 = vsyncpa [#allocation6], 0
    %s18 = scalar_lea.sflag [#allocation6], 1
    %19 = vsyncpa %s18, 0
    loop: start=0, step=1, limit=10
    $region2: #{tpu_custom_call.1} parent=1 // loop_pre_header
      _
    $region3: #{tpu_custom_call.1} parent=1 // loop_header
      %s21 = sphi 0, %s25
      %p22 = scmp.ge.s32.totalorder %s21, 10
      %s28 = sphi 0, %s40
      %s29 = sphi 0, %s36
      %s30 = sphi 0, %s28
      %s31 = sphi 0, %s29
      %s32 = sphi 0, %s30
      %s33 = sphi 0, %s31
      %s47 = sphi 0, %s49
      %s50 = sphi 0, %s47
      %s51 = sphi 0, %s50
      %s67 = sphi 0, %s51
      %s71 = sphi 0, %s71
      %s73 = sphi 0, %s71
      %s74 = sphi 0, %s73
      %s88 = sphi 0, %s74
      %s92 = sphi 0, %s92
      %s94 = sphi 0, %s92
      %s95 = sphi 0, %s94
      %s109 = sphi 0, %s95
      %s113 = sphi 0, %s113
      %s115 = sphi 0, %s113
      %s116 = sphi 0, %s115
      %s130 = sphi 0, %s116
      %s134 = sphi 0, %s134
      %s136 = sphi 0, %s134
      %s137 = sphi 0, %s136
      %s151 = sphi 0, %s137
      %s155 = sphi 0, %s155
      %s157 = sphi 0, %s155
      %s158 = sphi 0, %s157
      %s172 = sphi 0, %s158
      %s176 = sphi 0, %s176
      %s178 = sphi 0, %s176
      %s179 = sphi 0, %s178
      %s193 = sphi 0, %s179
      %s201 = sphi 0, %s203
      %s204 = sphi 0, %s201
      %s205 = sphi 0, %s204
      %s221 = sphi 0, %s205
    $region4: #{tpu_custom_call.1} parent=1 // loop_header_branch
      %24 = sbr.rel (%p22) target = $region8
    $region5: #{tpu_custom_call.1} parent=1 // loop_body
      %s26 = ssub.s32 %s21, 1
      %s27 = ssub.s32 %s21, 2
      %s34 = sadd.s32 1, %s29
      %p35 = scmp.ge.s32.totalorder %s34, 4
      %s36 = scalar_select %p35, 0, %s34
      %s37 = sadd.s32 1, %s28
      %s38 = scalar_select %p35, %s37, %s28
      %p39 = scmp.ge.s32.totalorder %s38, 2
      %s40 = scalar_select %p39, 0, %s38
      %s41 = ssub.s32 1, %s28
      %s42 = smul.u32 %s29, %s41
      %s43 = ssub.s32 1, %s40
      %s44 = smul.u32 %s36, %s43
      %s45 = ssub.s32 %s42, %s44
      %p46 = scmp.eq.s32.totalorder %s45, 0
      %s48 = sadd.s32 %s47, 1
      %s49 = scalar_select %p46, %s47, %s48
      %p52 = pneg %p46
      %p53 = scmp.eq.s32.totalorder %s21, 7
      %p54 = por %p52, %p53
      %p55 = scmp.ne.s32.totalorder %s47, %s50
      %p56 = scmp.eq.s32.totalorder %s21, 0
      %p57 = por %p55, %p56
      %p58 = scmp.ne.s32.totalorder %s47, %s50
      %p59 = scmp.eq.s32.totalorder %s26, 7
      %p60 = por %p58, %p59
      %p61 = scmp.ne.s32.totalorder %s50, %s51
      %p62 = scmp.eq.s32.totalorder %s26, 0
      %p63 = por %p61, %p62
      %p64 = scmp.ne.s32.totalorder %s50, %s51
      %p65 = scmp.eq.s32.totalorder %s27, 7
      %p66 = por %p64, %p65
      %p68 = scmp.ne.s32.totalorder %s51, %s67
      %p69 = scmp.eq.s32.totalorder %s27, 0
      %p70 = por %p68, %p69
      %s72 = sadd.s32 %s71, 1
      %p75 = scmp.eq.s32.totalorder %s21, 7
      %p76 = scmp.ne.s32.totalorder %s71, %s73
      %p77 = scmp.eq.s32.totalorder %s21, 0
      %p78 = por %p76, %p77
      %p79 = scmp.ne.s32.totalorder %s71, %s73
      %p80 = scmp.eq.s32.totalorder %s26, 7
      %p81 = por %p79, %p80
      %p82 = scmp.ne.s32.totalorder %s73, %s74
      %p83 = scmp.eq.s32.totalorder %s26, 0
      %p84 = por %p82, %p83
      %p85 = scmp.ne.s32.totalorder %s73, %s74
      %p86 = scmp.eq.s32.totalorder %s27, 7
      %p87 = por %p85, %p86
      %p89 = scmp.ne.s32.totalorder %s74, %s88
      %p90 = scmp.eq.s32.totalorder %s27, 0
      %p91 = por %p89, %p90
      %s93 = sadd.s32 %s92, 1
      %p96 = scmp.eq.s32.totalorder %s21, 7
      %p97 = scmp.ne.s32.totalorder %s92, %s94
      %p98 = scmp.eq.s32.totalorder %s21, 0
      %p99 = por %p97, %p98
      %p100 = scmp.ne.s32.totalorder %s92, %s94
      %p101 = scmp.eq.s32.totalorder %s26, 7
      %p102 = por %p100, %p101
      %p103 = scmp.ne.s32.totalorder %s94, %s95
      %p104 = scmp.eq.s32.totalorder %s26, 0
      %p105 = por %p103, %p104
      %p106 = scmp.ne.s32.totalorder %s94, %s95
      %p107 = scmp.eq.s32.totalorder %s27, 7
      %p108 = por %p106, %p107
      %p110 = scmp.ne.s32.totalorder %s95, %s109
      %p111 = scmp.eq.s32.totalorder %s27, 0
      %p112 = por %p110, %p111
      %s114 = sadd.s32 %s113, 1
      %p117 = scmp.eq.s32.totalorder %s21, 7
      %p118 = scmp.ne.s32.totalorder %s113, %s115
      %p119 = scmp.eq.s32.totalorder %s21, 0
      %p120 = por %p118, %p119
      %p121 = scmp.ne.s32.totalorder %s113, %s115
      %p122 = scmp.eq.s32.totalorder %s26, 7
      %p123 = por %p121, %p122
      %p124 = scmp.ne.s32.totalorder %s115, %s116
      %p125 = scmp.eq.s32.totalorder %s26, 0
      %p126 = por %p124, %p125
      %p127 = scmp.ne.s32.totalorder %s115, %s116
      %p128 = scmp.eq.s32.totalorder %s27, 7
      %p129 = por %p127, %p128
      %p131 = scmp.ne.s32.totalorder %s116, %s130
      %p132 = scmp.eq.s32.totalorder %s27, 0
      %p133 = por %p131, %p132
      %s135 = sadd.s32 %s134, 1
      %p138 = scmp.eq.s32.totalorder %s21, 7
      %p139 = scmp.ne.s32.totalorder %s134, %s136
      %p140 = scmp.eq.s32.totalorder %s21, 0
      %p141 = por %p139, %p140
      %p142 = scmp.ne.s32.totalorder %s134, %s136
      %p143 = scmp.eq.s32.totalorder %s26, 7
      %p144 = por %p142, %p143
      %p145 = scmp.ne.s32.totalorder %s136, %s137
      %p146 = scmp.eq.s32.totalorder %s26, 0
      %p147 = por %p145, %p146
      %p148 = scmp.ne.s32.totalorder %s136, %s137
      %p149 = scmp.eq.s32.totalorder %s27, 7
      %p150 = por %p148, %p149
      %p152 = scmp.ne.s32.totalorder %s137, %s151
      %p153 = scmp.eq.s32.totalorder %s27, 0
      %p154 = por %p152, %p153
      %s156 = sadd.s32 %s155, 1
      %p159 = scmp.eq.s32.totalorder %s21, 7
      %p160 = scmp.ne.s32.totalorder %s155, %s157
      %p161 = scmp.eq.s32.totalorder %s21, 0
      %p162 = por %p160, %p161
      %p163 = scmp.ne.s32.totalorder %s155, %s157
      %p164 = scmp.eq.s32.totalorder %s26, 7
      %p165 = por %p163, %p164
      %p166 = scmp.ne.s32.totalorder %s157, %s158
      %p167 = scmp.eq.s32.totalorder %s26, 0
      %p168 = por %p166, %p167
      %p169 = scmp.ne.s32.totalorder %s157, %s158
      %p170 = scmp.eq.s32.totalorder %s27, 7
      %p171 = por %p169, %p170
      %p173 = scmp.ne.s32.totalorder %s158, %s172
      %p174 = scmp.eq.s32.totalorder %s27, 0
      %p175 = por %p173, %p174
      %s177 = sadd.s32 %s176, 1
      %p180 = scmp.eq.s32.totalorder %s21, 7
      %p181 = scmp.ne.s32.totalorder %s176, %s178
      %p182 = scmp.eq.s32.totalorder %s21, 0
      %p183 = por %p181, %p182
      %p184 = scmp.ne.s32.totalorder %s176, %s178
      %p185 = scmp.eq.s32.totalorder %s26, 7
      %p186 = por %p184, %p185
      %p187 = scmp.ne.s32.totalorder %s178, %s179
      %p188 = scmp.eq.s32.totalorder %s26, 0
      %p189 = por %p187, %p188
      %p190 = scmp.ne.s32.totalorder %s178, %s179
      %p191 = scmp.eq.s32.totalorder %s27, 7
      %p192 = por %p190, %p191
      %p194 = scmp.ne.s32.totalorder %s179, %s193
      %p195 = scmp.eq.s32.totalorder %s27, 0
      %p196 = por %p194, %p195
      %s197 = smul.u32 %s29, %s28
      %s198 = smul.u32 %s36, %s40
      %s199 = ssub.s32 %s197, %s198
      %p200 = scmp.eq.s32.totalorder %s199, 0
      %s202 = sadd.s32 %s201, 1
      %s203 = scalar_select %p200, %s201, %s202
      %p206 = pneg %p200
      %p207 = scmp.eq.s32.totalorder %s21, 7
      %p208 = por %p206, %p207
      %p209 = scmp.ne.s32.totalorder %s201, %s204
      %p210 = scmp.eq.s32.totalorder %s21, 0
      %p211 = por %p209, %p210
      %p212 = scmp.ne.s32.totalorder %s201, %s204
      %p213 = scmp.eq.s32.totalorder %s26, 7
      %p214 = por %p212, %p213
      %p215 = scmp.ne.s32.totalorder %s204, %s205
      %p216 = scmp.eq.s32.totalorder %s26, 0
      %p217 = por %p215, %p216
      %p218 = scmp.ne.s32.totalorder %s204, %s205
      %p219 = scmp.eq.s32.totalorder %s27, 7
      %p220 = por %p218, %p219
      %p222 = scmp.ne.s32.totalorder %s205, %s221
      %p223 = scmp.eq.s32.totalorder %s27, 0
      %p224 = por %p222, %p223
      %p225 = scmp.le.s32.totalorder 1, %s21
      %p226 = scmp.lt.s32.totalorder %s21, 9
      %p227 = pnand %p225, %p226
      %p228 = pneg %p227
      // Predicated region
      $region9: #{tpu_custom_call.1} parent=5 // pred_check
        _
      $region10: #{tpu_custom_call.1} parent=5 // pred_check_branch
        %230 = sbr.rel (%p227) target = $region12
      $region11: #{tpu_custom_call.1} parent=5 // pred_region
        %s231 = ssub.s32 %s21, 1
        // Predicated region
        $region13: #{tpu_custom_call.1} parent=11 // pred_check
          %p232 = pneg %p84
        $region14: #{tpu_custom_call.1} parent=11 // pred_check_branch
          %234 = sbr.rel (%p232) target = $region16
        $region15: #{tpu_custom_call.1} parent=11 // pred_region
          %236 = vsyncadd [#allocation8], 0
          %s237 = sshll.u32 %s1, 4
          %s238 = int_to_ptr.hbm [resolvable:$true] %s237
          %s239 = sshll.u32 [#allocation7], 4
          %s240 = int_to_ptr.vmem [resolvable:$true] %s239
          %245 = dma.hbm_to_vmem [thread:$0]  %s238, 4096, %s240, [#allocation8], 128, 128, 8
        $region16: #{tpu_custom_call.1} parent=11 // pred_fallthru
          _
        // Predicated region
        $region17: #{tpu_custom_call.1} parent=11 // pred_check
          %p246 = pneg %p105
        $region18: #{tpu_custom_call.1} parent=11 // pred_check_branch
          %248 = sbr.rel (%p246) target = $region20
        $region19: #{tpu_custom_call.1} parent=11 // pred_region
          %250 = vsyncadd [#allocation8], 0
          %s252 = sshll.u32 %s2, 4
          %s253 = int_to_ptr.hbm [resolvable:$true] %s252
          %s254 = sshll.u32 [#allocation9], 4
          %s255 = int_to_ptr.vmem [resolvable:$true] %s254
          %257 = dma.hbm_to_vmem [thread:$0]  %s253, 32, %s255, [#allocation8]
        $region20: #{tpu_custom_call.1} parent=11 // pred_fallthru
          _
        // Predicated region
        $region21: #{tpu_custom_call.1} parent=11 // pred_check
          %p258 = pneg %p126
        $region22: #{tpu_custom_call.1} parent=11 // pred_check_branch
          %260 = sbr.rel (%p258) target = $region24
        $region23: #{tpu_custom_call.1} parent=11 // pred_region
          %262 = vsyncadd [#allocation11], 0
          %s263 = sshll.u32 %s3, 4
          %s264 = int_to_ptr.hbm [resolvable:$true] %s263
          %s265 = sshll.u32 [#allocation10], 4
          %s266 = int_to_ptr.vmem [resolvable:$true] %s265
          %271 = dma.hbm_to_vmem [thread:$0]  %s264, 4096, %s266, [#allocation11], 256, 256, 16
        $region24: #{tpu_custom_call.1} parent=11 // pred_fallthru
          _
        // Predicated region
        $region25: #{tpu_custom_call.1} parent=11 // pred_check
          %p272 = pneg %p147
        $region26: #{tpu_custom_call.1} parent=11 // pred_check_branch
          %274 = sbr.rel (%p272) target = $region28
        $region27: #{tpu_custom_call.1} parent=11 // pred_region
          _
        $region28: #{tpu_custom_call.1} parent=11 // pred_fallthru
          _
        // Predicated region
        $region29: #{tpu_custom_call.1} parent=11 // pred_check
          %p275 = pneg %p168
        $region30: #{tpu_custom_call.1} parent=11 // pred_check_branch
          %277 = sbr.rel (%p275) target = $region32
        $region31: #{tpu_custom_call.1} parent=11 // pred_region
          _
        $region32: #{tpu_custom_call.1} parent=11 // pred_fallthru
          _
        // Predicated region
        $region33: #{tpu_custom_call.1} parent=11 // pred_check
          %p278 = pneg %p189
        $region34: #{tpu_custom_call.1} parent=11 // pred_check_branch
          %280 = sbr.rel (%p278) target = $region36
        $region35: #{tpu_custom_call.1} parent=11 // pred_region
          _
        $region36: #{tpu_custom_call.1} parent=11 // pred_fallthru
          _
      $region12: #{tpu_custom_call.1} parent=5 // pred_fallthru
        _
      %p281 = scmp.lt.s32.totalorder %s21, 8
      // Predicated region
      $region37: #{tpu_custom_call.1} parent=5 // pred_check
        %p282 = pneg %p281
      $region38: #{tpu_custom_call.1} parent=5 // pred_check_branch
        %284 = sbr.rel (%p282) target = $region40
      $region39: #{tpu_custom_call.1} parent=5 // pred_region
        // Predicated region
        $region41: #{tpu_custom_call.1} parent=39 // pred_check
          %p285 = pneg %p57
        $region42: #{tpu_custom_call.1} parent=39 // pred_check_branch
          %287 = sbr.rel (%p285) target = $region44
        $region43: #{tpu_custom_call.1} parent=39 // pred_region
          %s288 = sand.u32 %s47, 1
          %s289 = scalar_lea.sflag [#allocation5], %s288
          %s290 = sand.u32 %s47, 1
          %s291 = smul.addr %s290, 64
          %s292 = scalar_lea.vmem [#allocation4], %s291
          %s293 = ssub.s32 1, %s28
          %s294 = smul.u32 %s29, %s293
          %s295 = smul.u32 8, %s294
          %297 = vsyncadd %s289, 0
          %s298 = smul.addr %s295, 8
          %s299 = scalar_lea.hbm %s0, %s298
          %s300 = sshll.u32 %s299, 4
          %s301 = int_to_ptr.hbm [resolvable:$true] %s300
          %s302 = sshll.u32 %s292, 4
          %s303 = int_to_ptr.vmem [resolvable:$true] %s302
          %308 = dma.hbm_to_vmem [thread:$0]  %s301, 1024, %s303, %s289, 128, 128, 8
        $region44: #{tpu_custom_call.1} parent=39 // pred_fallthru
          _
      $region40: #{tpu_custom_call.1} parent=5 // pred_fallthru
        _
      %p309 = scmp.le.s32.totalorder 1, %s21
      %p310 = scmp.lt.s32.totalorder %s21, 9
      %p311 = pnand %p309, %p310
      %p312 = pneg %p311
      // Predicated region
      $region45: #{tpu_custom_call.1} parent=5 // pred_check
        _
      $region46: #{tpu_custom_call.1} parent=5 // pred_check_branch
        %314 = sbr.rel (%p311) target = $region48
      $region47: #{tpu_custom_call.1} parent=5 // pred_region
        %s315 = ssub.s32 %s21, 1
        %s316 = sand.u32 %s50, 1
        %s317 = scalar_lea.sflag [#allocation5], %s316
        %s318 = sand.u32 %s50, 1
        %s319 = smul.addr %s318, 64
        %s320 = scalar_lea.vmem [#allocation4], %s319
        // Predicated region
        $region49: #{tpu_custom_call.1} parent=47 // pred_check
          %p321 = pneg %p63
        $region50: #{tpu_custom_call.1} parent=47 // pred_check_branch
          %323 = sbr.rel (%p321) target = $region52
        $region51: #{tpu_custom_call.1} parent=47 // pred_region
          %325 = dma.done %s317, 1024
        $region52: #{tpu_custom_call.1} parent=47 // pred_fallthru
          _
        // Predicated region
        $region53: #{tpu_custom_call.1} parent=47 // pred_check
          %p326 = pneg %p84
        $region54: #{tpu_custom_call.1} parent=47 // pred_check_branch
          %328 = sbr.rel (%p326) target = $region56
        $region55: #{tpu_custom_call.1} parent=47 // pred_region
          %330 = dma.done [#allocation8], 4096
        $region56: #{tpu_custom_call.1} parent=47 // pred_fallthru
          _
        // Predicated region
        $region57: #{tpu_custom_call.1} parent=47 // pred_check
          %p331 = pneg %p105
        $region58: #{tpu_custom_call.1} parent=47 // pred_check_branch
          %333 = sbr.rel (%p331) target = $region60
        $region59: #{tpu_custom_call.1} parent=47 // pred_region
          %335 = dma.done [#allocation8], 32
        $region60: #{tpu_custom_call.1} parent=47 // pred_fallthru
          _
        // Predicated region
        $region61: #{tpu_custom_call.1} parent=47 // pred_check
          %p336 = pneg %p126
        $region62: #{tpu_custom_call.1} parent=47 // pred_check_branch
          %338 = sbr.rel (%p336) target = $region64
        $region63: #{tpu_custom_call.1} parent=47 // pred_region
          %340 = dma.done [#allocation11], 4096
        $region64: #{tpu_custom_call.1} parent=47 // pred_fallthru
          _
        %s341 = sand.u32 %s50, 1
        %s342 = scalar_lea.sflag [#allocation5], %s341
        %s343 = sand.u32 %s50, 1
        %s344 = smul.addr %s343, 64
        %s345 = scalar_lea.vmem [#allocation4], %s344
        %p346 = pneg %p63
        %p347 = pneg %p60
        %p348 = pneg %p84
        %p349 = pneg %p81
        %p350 = pneg %p105
        %p351 = pneg %p102
        %p352 = pneg %p126
        %p353 = pneg %p123
        %p354 = pneg %p147
        %p355 = pneg %p144
        %p356 = pneg %p168
        %p357 = pneg %p165
        %p358 = pneg %p189
        %p359 = pneg %p186
        %p360 = pneg %p217
        %p361 = pneg %p214
        %s362 = sand.u32 %s204, 1
        %s363 = scalar_lea.sflag [#allocation6], %s362
        %s364 = sand.u32 %s204, 1
        %s365 = smul.addr %s364, 64
        %s366 = scalar_lea.vmem [#allocation12], %s365
        %s367 = ssub.s32 1, %s30
        %s368 = smul.u32 %s31, %s367
        %s369 = smul.u32 8, %s368
        %s370 = smul.u32 %s31, %s30
        %s371 = smul.u32 8, %s370
        %p372 = scmp.eq.s32.totalorder %s30, 0
        %p373 = scmp.eq.s32.totalorder %s31, 0
        %p374 = pnand %p372, %p373
        %p375 = pneg %p374
        // Predicated region
        $region65: #{tpu_custom_call.1} parent=47 // pred_check
          _
        $region66: #{tpu_custom_call.1} parent=47 // pred_check_branch
          %377 = sbr.rel (%p374) target = $region68
        $region67: #{tpu_custom_call.1} parent=47 // pred_region
          %378 = vst [vmem:[#allocation3] sm:$0x3] 0.0
        $region68: #{tpu_custom_call.1} parent=47 // pred_fallthru
          _
        // Predicated region
        $region69: #{tpu_custom_call.1} parent=47 // pred_check
          %p379 = pneg %p372
        $region70: #{tpu_custom_call.1} parent=47 // pred_check_branch
          %381 = sbr.rel (%p379) target = $region72
        $region71: #{tpu_custom_call.1} parent=47 // pred_region
          %v382 = vld [vmem:[%s320] sm:$0xff]
          %v383 = vld [vmem:[%s320 + $0x8] sm:$0xff]
          %v384 = vld [vmem:[%s320 + $0x10] sm:$0xff]
          %v385 = vld [vmem:[%s320 + $0x18] sm:$0xff]
          %v386 = vld [vmem:[%s320 + $0x20] sm:$0xff]
          %v387 = vld [vmem:[%s320 + $0x28] sm:$0xff]
          %v388 = vld [vmem:[%s320 + $0x30] sm:$0xff]
          %v389 = vld [vmem:[%s320 + $0x38] sm:$0xff]
          %v390 = vld [vmem:[#allocation7] sm:$0xff]
          %v391 = vld [vmem:[#allocation7 + $0x8] sm:$0xff]
          %v392 = vld [vmem:[#allocation7 + $0x10] sm:$0xff]
          %v393 = vld [vmem:[#allocation7 + $0x18] sm:$0xff]
          %v394 = vld [vmem:[#allocation7 + $0x20] sm:$0xff]
          %v395 = vld [vmem:[#allocation7 + $0x28] sm:$0xff]
          %v396 = vld [vmem:[#allocation7 + $0x30] sm:$0xff]
          %v397 = vld [vmem:[#allocation7 + $0x38] sm:$0xff]
          %v398 = vld [vmem:[#allocation7 + $0x40] sm:$0xff]
          %v399 = vld [vmem:[#allocation7 + $0x48] sm:$0xff]
          %v400 = vld [vmem:[#allocation7 + $0x50] sm:$0xff]
          %v401 = vld [vmem:[#allocation7 + $0x58] sm:$0xff]
          %v402 = vld [vmem:[#allocation7 + $0x60] sm:$0xff]
          %v403 = vld [vmem:[#allocation7 + $0x68] sm:$0xff]
          %v404 = vld [vmem:[#allocation7 + $0x70] sm:$0xff]
          %v405 = vld [vmem:[#allocation7 + $0x78] sm:$0xff]
          %v406 = vld [vmem:[#allocation7 + $0x80] sm:$0xff]
          %v407 = vld [vmem:[#allocation7 + $0x88] sm:$0xff]
          %v408 = vld [vmem:[#allocation7 + $0x90] sm:$0xff]
          %v409 = vld [vmem:[#allocation7 + $0x98] sm:$0xff]
          %v410 = vld [vmem:[#allocation7 + $0xa0] sm:$0xff]
          %v411 = vld [vmem:[#allocation7 + $0xa8] sm:$0xff]
          %v412 = vld [vmem:[#allocation7 + $0xb0] sm:$0xff]
          %v413 = vld [vmem:[#allocation7 + $0xb8] sm:$0xff]
          %v414 = vld [vmem:[#allocation7 + $0xc0] sm:$0xff]
          %v415 = vld [vmem:[#allocation7 + $0xc8] sm:$0xff]
          %v416 = vld [vmem:[#allocation7 + $0xd0] sm:$0xff]
          %v417 = vld [vmem:[#allocation7 + $0xd8] sm:$0xff]
          %v418 = vld [vmem:[#allocation7 + $0xe0] sm:$0xff]
          %v419 = vld [vmem:[#allocation7 + $0xe8] sm:$0xff]
          %v420 = vld [vmem:[#allocation7 + $0xf0] sm:$0xff]
          %v421 = vld [vmem:[#allocation7 + $0xf8] sm:$0xff]
          %v422 = vld [vmem:[#allocation9] sm:$0x3]
          %v424 = vperm.slane %v422, 0
          %v425 = vperm.slane %v422, 1
          %428 = vmatpush.xpose.msra.mxu0 %v405
          %429 = vmatpush.xpose.msra.mxu0 %v404
          %430 = vmatpush.xpose.msra.mxu0 %v403
          %431 = vmatpush.xpose.msra.mxu0 %v402
          %432 = vmatpush.xpose.msra.mxu0 %v401
          %433 = vmatpush.xpose.msra.mxu0 %v400
          %434 = vmatpush.xpose.msra.mxu0 %v399
          %435 = vmatpush.xpose.msra.mxu0 %v398
          %436 = vmatpush.xpose.msra.mxu0 %v397
          %437 = vmatpush.xpose.msra.mxu0 %v396
          %438 = vmatpush.xpose.msra.mxu0 %v395
          %439 = vmatpush.xpose.msra.mxu0 %v394
          %440 = vmatpush.xpose.msra.mxu0 %v393
          %441 = vmatpush.xpose.msra.mxu0 %v392
          %442 = vmatpush.xpose.msra.mxu0 %v391
          %443 = vmatpush.xpose.msra.mxu0 %v390
          %444 = vmatmul.f32.gmra.mxu0 %v382
          %v445 = vpop.f32.mrf.mxu0
          %v446 = vadd.f32 %v424, %v445
          %447 = vmatmul.f32.gmra.mxu0 %v383
          %v448 = vpop.f32.mrf.mxu0
          %v449 = vadd.f32 %v424, %v448
          %450 = vmatmul.f32.gmra.mxu0 %v384
          %v451 = vpop.f32.mrf.mxu0
          %v452 = vadd.f32 %v424, %v451
          %453 = vmatmul.f32.gmra.mxu0 %v385
          %v454 = vpop.f32.mrf.mxu0
          %v455 = vadd.f32 %v424, %v454
          %456 = vmatmul.f32.gmra.mxu0 %v386
          %v457 = vpop.f32.mrf.mxu0
          %v458 = vadd.f32 %v424, %v457
          %459 = vmatmul.f32.gmra.mxu0 %v387
          %v460 = vpop.f32.mrf.mxu0
          %v461 = vadd.f32 %v424, %v460
          %462 = vmatmul.f32.gmra.mxu0 %v388
          %v463 = vpop.f32.mrf.mxu0
          %v464 = vadd.f32 %v424, %v463
          %465 = vmatmul.f32.gmra.mxu0 %v389
          %v466 = vpop.f32.mrf.mxu0
          %v467 = vadd.f32 %v424, %v466
          %468 = vdwg.mxu0
          %469 = vmatpush.xpose.msra.mxu0 %v421
          %470 = vmatpush.xpose.msra.mxu0 %v420
          %471 = vmatpush.xpose.msra.mxu0 %v419
          %472 = vmatpush.xpose.msra.mxu0 %v418
          %473 = vmatpush.xpose.msra.mxu0 %v417
          %474 = vmatpush.xpose.msra.mxu0 %v416
          %475 = vmatpush.xpose.msra.mxu0 %v415
          %476 = vmatpush.xpose.msra.mxu0 %v414
          %477 = vmatpush.xpose.msra.mxu0 %v413
          %478 = vmatpush.xpose.msra.mxu0 %v412
          %479 = vmatpush.xpose.msra.mxu0 %v411
          %480 = vmatpush.xpose.msra.mxu0 %v410
          %481 = vmatpush.xpose.msra.mxu0 %v409
          %482 = vmatpush.xpose.msra.mxu0 %v408
          %483 = vmatpush.xpose.msra.mxu0 %v407
          %484 = vmatpush.xpose.msra.mxu0 %v406
          %485 = vmatmul.f32.gmra.mxu0 %v382
          %v486 = vpop.f32.mrf.mxu0
          %v487 = vadd.f32 %v425, %v486
          %488 = vmatmul.f32.gmra.mxu0 %v383
          %v489 = vpop.f32.mrf.mxu0
          %v490 = vadd.f32 %v425, %v489
          %491 = vmatmul.f32.gmra.mxu0 %v384
          %v492 = vpop.f32.mrf.mxu0
          %v493 = vadd.f32 %v425, %v492
          %494 = vmatmul.f32.gmra.mxu0 %v385
          %v495 = vpop.f32.mrf.mxu0
          %v496 = vadd.f32 %v425, %v495
          %497 = vmatmul.f32.gmra.mxu0 %v386
          %v498 = vpop.f32.mrf.mxu0
          %v499 = vadd.f32 %v425, %v498
          %500 = vmatmul.f32.gmra.mxu0 %v387
          %v501 = vpop.f32.mrf.mxu0
          %v502 = vadd.f32 %v425, %v501
          %503 = vmatmul.f32.gmra.mxu0 %v388
          %v504 = vpop.f32.mrf.mxu0
          %v505 = vadd.f32 %v425, %v504
          %506 = vmatmul.f32.gmra.mxu0 %v389
          %v507 = vpop.f32.mrf.mxu0
          %v508 = vadd.f32 %v425, %v507
          %509 = vdwg.mxu0
          %v510 = vmax.f32 %v446, 0.0
          %v511 = vmax.f32 %v487, 0.0
          %v512 = vmax.f32 %v449, 0.0
          %v513 = vmax.f32 %v490, 0.0
          %v514 = vmax.f32 %v452, 0.0
          %v515 = vmax.f32 %v493, 0.0
          %v516 = vmax.f32 %v455, 0.0
          %v517 = vmax.f32 %v496, 0.0
          %v518 = vmax.f32 %v458, 0.0
          %v519 = vmax.f32 %v499, 0.0
          %v520 = vmax.f32 %v461, 0.0
          %v521 = vmax.f32 %v502, 0.0
          %v522 = vmax.f32 %v464, 0.0
          %v523 = vmax.f32 %v505, 0.0
          %v524 = vmax.f32 %v467, 0.0
          %v525 = vmax.f32 %v508, 0.0
          %v526 = vld [vmem:[#allocation10] sm:$0xff]
          %v527 = vld [vmem:[#allocation10 + $0x8] sm:$0xff]
          %v528 = vld [vmem:[#allocation10 + $0x10] sm:$0xff]
          %v529 = vld [vmem:[#allocation10 + $0x18] sm:$0xff]
          %v530 = vld [vmem:[#allocation10 + $0x20] sm:$0xff]
          %v531 = vld [vmem:[#allocation10 + $0x28] sm:$0xff]
          %v532 = vld [vmem:[#allocation10 + $0x30] sm:$0xff]
          %v533 = vld [vmem:[#allocation10 + $0x38] sm:$0xff]
          %v534 = vld [vmem:[#allocation10 + $0x40] sm:$0xff]
          %v535 = vld [vmem:[#allocation10 + $0x48] sm:$0xff]
          %v536 = vld [vmem:[#allocation10 + $0x50] sm:$0xff]
          %v537 = vld [vmem:[#allocation10 + $0x58] sm:$0xff]
          %v538 = vld [vmem:[#allocation10 + $0x60] sm:$0xff]
          %v539 = vld [vmem:[#allocation10 + $0x68] sm:$0xff]
          %v540 = vld [vmem:[#allocation10 + $0x70] sm:$0xff]
          %v541 = vld [vmem:[#allocation10 + $0x78] sm:$0xff]
          %v542 = vld [vmem:[#allocation10 + $0x80] sm:$0xff]
          %v543 = vld [vmem:[#allocation10 + $0x88] sm:$0xff]
          %v544 = vld [vmem:[#allocation10 + $0x90] sm:$0xff]
          %v545 = vld [vmem:[#allocation10 + $0x98] sm:$0xff]
          %v546 = vld [vmem:[#allocation10 + $0xa0] sm:$0xff]
          %v547 = vld [vmem:[#allocation10 + $0xa8] sm:$0xff]
          %v548 = vld [vmem:[#allocation10 + $0xb0] sm:$0xff]
          %v549 = vld [vmem:[#allocation10 + $0xb8] sm:$0xff]
          %v550 = vld [vmem:[#allocation10 + $0xc0] sm:$0xff]
          %v551 = vld [vmem:[#allocation10 + $0xc8] sm:$0xff]
          %v552 = vld [vmem:[#allocation10 + $0xd0] sm:$0xff]
          %v553 = vld [vmem:[#allocation10 + $0xd8] sm:$0xff]
          %v554 = vld [vmem:[#allocation10 + $0xe0] sm:$0xff]
          %v555 = vld [vmem:[#allocation10 + $0xe8] sm:$0xff]
          %v556 = vld [vmem:[#allocation10 + $0xf0] sm:$0xff]
          %v557 = vld [vmem:[#allocation10 + $0xf8] sm:$0xff]
          %v558 = vld [vmem:[%s4] sm:$0x1]
          %v560 = vperm.slane %v558, 0
          %562 = vmatpush.xpose.msra.mxu0 %v556
          %563 = vmatpush.xpose.msra.mxu0 %v554
          %564 = vmatpush.xpose.msra.mxu0 %v552
          %565 = vmatpush.xpose.msra.mxu0 %v550
          %566 = vmatpush.xpose.msra.mxu0 %v548
          %567 = vmatpush.xpose.msra.mxu0 %v546
          %568 = vmatpush.xpose.msra.mxu0 %v544
          %569 = vmatpush.xpose.msra.mxu0 %v542
          %570 = vmatpush.xpose.msra.mxu0 %v540
          %571 = vmatpush.xpose.msra.mxu0 %v538
          %572 = vmatpush.xpose.msra.mxu0 %v536
          %573 = vmatpush.xpose.msra.mxu0 %v534
          %574 = vmatpush.xpose.msra.mxu0 %v532
          %575 = vmatpush.xpose.msra.mxu0 %v530
          %576 = vmatpush.xpose.msra.mxu0 %v528
          %577 = vmatpush.xpose.msra.mxu0 %v526
          %578 = vmatmul.f32.gmra.mxu0 %v510
          %v579 = vpop.f32.mrf.mxu0
          %v580 = vadd.f32 %v560, %v579
          %581 = vmatmul.f32.gmra.mxu0 %v512
          %v582 = vpop.f32.mrf.mxu0
          %v583 = vadd.f32 %v560, %v582
          %584 = vmatmul.f32.gmra.mxu0 %v514
          %v585 = vpop.f32.mrf.mxu0
          %v586 = vadd.f32 %v560, %v585
          %587 = vmatmul.f32.gmra.mxu0 %v516
          %v588 = vpop.f32.mrf.mxu0
          %v589 = vadd.f32 %v560, %v588
          %590 = vmatmul.f32.gmra.mxu0 %v518
          %v591 = vpop.f32.mrf.mxu0
          %v592 = vadd.f32 %v560, %v591
          %593 = vmatmul.f32.gmra.mxu0 %v520
          %v594 = vpop.f32.mrf.mxu0
          %v595 = vadd.f32 %v560, %v594
          %596 = vmatmul.f32.gmra.mxu0 %v522
          %v597 = vpop.f32.mrf.mxu0
          %v598 = vadd.f32 %v560, %v597
          %599 = vmatmul.f32.gmra.mxu0 %v524
          %v600 = vpop.f32.mrf.mxu0
          %v601 = vadd.f32 %v560, %v600
          %602 = vdwg.mxu0
          %603 = vmatpush.xpose.msra.mxu0 %v557
          %604 = vmatpush.xpose.msra.mxu0 %v555
          %605 = vmatpush.xpose.msra.mxu0 %v553
          %606 = vmatpush.xpose.msra.mxu0 %v551
          %607 = vmatpush.xpose.msra.mxu0 %v549
          %608 = vmatpush.xpose.msra.mxu0 %v547
          %609 = vmatpush.xpose.msra.mxu0 %v545
          %610 = vmatpush.xpose.msra.mxu0 %v543
          %611 = vmatpush.xpose.msra.mxu0 %v541
          %612 = vmatpush.xpose.msra.mxu0 %v539
          %613 = vmatpush.xpose.msra.mxu0 %v537
          %614 = vmatpush.xpose.msra.mxu0 %v535
          %615 = vmatpush.xpose.msra.mxu0 %v533
          %616 = vmatpush.xpose.msra.mxu0 %v531
          %617 = vmatpush.xpose.msra.mxu0 %v529
          %618 = vmatpush.xpose.msra.mxu0 %v527
          %619 = vmatmul.f32.gmra.mxu0 %v511
          %v620 = vpop.f32.mrf.mxu0
          %v621 = vadd.f32 %v580, %v620
          %622 = vmatmul.f32.gmra.mxu0 %v513
          %v623 = vpop.f32.mrf.mxu0
          %v624 = vadd.f32 %v583, %v623
          %625 = vmatmul.f32.gmra.mxu0 %v515
          %v626 = vpop.f32.mrf.mxu0
          %v627 = vadd.f32 %v586, %v626
          %628 = vmatmul.f32.gmra.mxu0 %v517
          %v629 = vpop.f32.mrf.mxu0
          %v630 = vadd.f32 %v589, %v629
          %631 = vmatmul.f32.gmra.mxu0 %v519
          %v632 = vpop.f32.mrf.mxu0
          %v633 = vadd.f32 %v592, %v632
          %634 = vmatmul.f32.gmra.mxu0 %v521
          %v635 = vpop.f32.mrf.mxu0
          %v636 = vadd.f32 %v595, %v635
          %637 = vmatmul.f32.gmra.mxu0 %v523
          %v638 = vpop.f32.mrf.mxu0
          %v639 = vadd.f32 %v598, %v638
          %640 = vmatmul.f32.gmra.mxu0 %v525
          %v641 = vpop.f32.mrf.mxu0
          %v642 = vadd.f32 %v601, %v641
          %643 = vdwg.mxu0
          %v644 = vadd.f32 %v621, %v382
          %v645 = vadd.f32 %v624, %v383
          %v646 = vadd.f32 %v627, %v384
          %v647 = vadd.f32 %v630, %v385
          %v648 = vadd.f32 %v633, %v386
          %v649 = vadd.f32 %v636, %v387
          %v650 = vadd.f32 %v639, %v388
          %v651 = vadd.f32 %v642, %v389
          %s652 = smul.u32 %s31, 64
          %s653 = scalar_lea.vmem [#allocation2], %s652
          %654 = vst [vmem:[%s653] sm:$0xff] %v644
          %655 = vst [vmem:[%s653 + $0x8] sm:$0xff] %v645
          %656 = vst [vmem:[%s653 + $0x10] sm:$0xff] %v646
          %657 = vst [vmem:[%s653 + $0x18] sm:$0xff] %v647
          %658 = vst [vmem:[%s653 + $0x20] sm:$0xff] %v648
          %659 = vst [vmem:[%s653 + $0x28] sm:$0xff] %v649
          %660 = vst [vmem:[%s653 + $0x30] sm:$0xff] %v650
          %661 = vst [vmem:[%s653 + $0x38] sm:$0xff] %v651
          %v662 = vld [vmem:[#allocation3] sm:$0x1]
          %v663 = vadd.f32 %v644, %v645
          %v664 = vadd.f32 %v663, %v646
          %v665 = vadd.f32 %v664, %v647
          %v666 = vadd.f32 %v665, %v648
          %v667 = vadd.f32 %v666, %v649
          %v668 = vadd.f32 %v667, %v650
          %v669 = vadd.f32 %v668, %v651
          %v670 = vrot.slane %v669, 4
          %v671 = vadd.f32 %v669, %v670
          %v672 = vrot.slane %v671, 2
          %v673 = vadd.f32 %v671, %v672
          %v674 = vrot.slane %v673, 1
          %v675 = vadd.f32 %v673, %v674
          %v676 = vadd.f32 %v662, %v675
          %677 = vst [vmem:[#allocation3] sm:$0x1] %v676
        $region72: #{tpu_custom_call.1} parent=47 // pred_fallthru
          _
        %p678 = scmp.eq.s32.totalorder %s30, 1
        %p679 = pnand %p678, %p373
        %p680 = pneg %p679
        // Predicated region
        $region73: #{tpu_custom_call.1} parent=47 // pred_check
          _
        $region74: #{tpu_custom_call.1} parent=47 // pred_check_branch
          %682 = sbr.rel (%p679) target = $region76
        $region75: #{tpu_custom_call.1} parent=47 // pred_region
          %v683 = vld [vmem:[#allocation3] sm:$0x1]
          %v684 = vmul.f32 %v683, 0.00390625
          loop: start=0, step=1, limit=4
          $region77: #{tpu_custom_call.1} parent=75 // loop_pre_header
            _
          $region78: #{tpu_custom_call.1} parent=75 // loop_header
            %s686 = sphi 0, %s690
            %p687 = scmp.ge.s32.totalorder %s686, 4
            %v691 = vphi 0.0, %v732
          $region79: #{tpu_custom_call.1} parent=75 // loop_header_branch
            %689 = sbr.rel (%p687) target = $region83
          $region80: #{tpu_custom_call.1} parent=75 // loop_body
            %s692 = smul.u32 %s686, 64
            %s693 = scalar_lea.vmem [#allocation2], %s692
            %v694 = vld [vmem:[%s693] sm:$0xff]
            %v695 = vld [vmem:[%s693 + $0x8] sm:$0xff]
            %v696 = vld [vmem:[%s693 + $0x10] sm:$0xff]
            %v697 = vld [vmem:[%s693 + $0x18] sm:$0xff]
            %v698 = vld [vmem:[%s693 + $0x20] sm:$0xff]
            %v699 = vld [vmem:[%s693 + $0x28] sm:$0xff]
            %v700 = vld [vmem:[%s693 + $0x30] sm:$0xff]
            %v701 = vld [vmem:[%s693 + $0x38] sm:$0xff]
            %v702 = vperm.slane %v684, 0
            %v703 = vsub.f32 %v694, %v702
            %v704 = vsub.f32 %v695, %v702
            %v705 = vsub.f32 %v696, %v702
            %v706 = vsub.f32 %v697, %v702
            %v707 = vsub.f32 %v698, %v702
            %v708 = vsub.f32 %v699, %v702
            %v709 = vsub.f32 %v700, %v702
            %v710 = vsub.f32 %v701, %v702
            %v711 = vmul.f32 %v703, %v703
            %v712 = vmul.f32 %v704, %v704
            %v713 = vmul.f32 %v705, %v705
            %v714 = vmul.f32 %v706, %v706
            %v715 = vmul.f32 %v707, %v707
            %v716 = vmul.f32 %v708, %v708
            %v717 = vmul.f32 %v709, %v709
            %v718 = vmul.f32 %v710, %v710
            %v719 = vadd.f32 %v711, %v712
            %v720 = vadd.f32 %v719, %v713
            %v721 = vadd.f32 %v720, %v714
            %v722 = vadd.f32 %v721, %v715
            %v723 = vadd.f32 %v722, %v716
            %v724 = vadd.f32 %v723, %v717
            %v725 = vadd.f32 %v724, %v718
            %v726 = vrot.slane %v725, 4
            %v727 = vadd.f32 %v725, %v726
            %v728 = vrot.slane %v727, 2
            %v729 = vadd.f32 %v727, %v728
            %v730 = vrot.slane %v729, 1
            %v731 = vadd.f32 %v729, %v730
            %v732 = vadd.f32 %v691, %v731
          $region81: #{tpu_custom_call.1} parent=75 // loop_footer
            %s690 = sadd.s32 1, %s686
          $region82: #{tpu_custom_call.1} parent=75 // loop_footer_branch
            %685 = sbr.rel target = $region78
          $region83: #{tpu_custom_call.1} parent=75 // loop_exit
            _
          %v733 = vmul.f32 %v691, 0.00390625
          %v734 = vld [vmem:[%s5] sm:$0x1]
          %v735 = vadd.f32 %v733, 1e-05
          %v736 = vrsqrt.pop %v735
          %v737 = vmul.f32 %v736, %v735
          %v738 = vmul.f32 %v737, %v736
          %v739 = vmul.f32 0.5, %v738
          %v740 = vsub.f32 1.5, %v739
          %v741 = vmul.f32 %v736, %v740
          %vm742 = vweird.f32 %v735
          %vm743 = vweird.f32 %v736
          %vm744 = vmor %vm742, %vm743
          %v745 = vsel %vm744, %v736, %v741
          %v746 = vmul.f32 %v734, %v745
          %v747 = vld [vmem:[%s6] sm:$0x1]
          %v748 = vmul.f32 %v684, %v746
          %v749 = vsub.f32 %v747, %v748
          %750 = vst [vmem:[#allocation3] sm:$0x1] %v746
          %751 = vst [vmem:[#allocation3 + $0x1] sm:$0x1] %v749
        $region76: #{tpu_custom_call.1} parent=47 // pred_fallthru
          _
        // Predicated region
        $region84: #{tpu_custom_call.1} parent=47 // pred_check
          %p752 = pneg %p678
        $region85: #{tpu_custom_call.1} parent=47 // pred_check_branch
          %754 = sbr.rel (%p752) target = $region87
        $region86: #{tpu_custom_call.1} parent=47 // pred_region
          %s755 = smul.u32 %s31, 64
          %s756 = scalar_lea.vmem [#allocation2], %s755
          %v757 = vld [vmem:[%s756] sm:$0xff]
          %v758 = vld [vmem:[%s756 + $0x8] sm:$0xff]
          %v759 = vld [vmem:[%s756 + $0x10] sm:$0xff]
          %v760 = vld [vmem:[%s756 + $0x18] sm:$0xff]
          %v761 = vld [vmem:[%s756 + $0x20] sm:$0xff]
          %v762 = vld [vmem:[%s756 + $0x28] sm:$0xff]
          %v763 = vld [vmem:[%s756 + $0x30] sm:$0xff]
          %v764 = vld [vmem:[%s756 + $0x38] sm:$0xff]
          %v765 = vld [vmem:[#allocation3] sm:$0x1]
          %v766 = vperm.slane %v765, 0
          %v767 = vmul.f32 %v757, %v766
          %v768 = vmul.f32 %v758, %v766
          %v769 = vmul.f32 %v759, %v766
          %v770 = vmul.f32 %v760, %v766
          %v771 = vmul.f32 %v761, %v766
          %v772 = vmul.f32 %v762, %v766
          %v773 = vmul.f32 %v763, %v766
          %v774 = vmul.f32 %v764, %v766
          %v775 = vld [vmem:[#allocation3 + $0x1] sm:$0x1]
          %v776 = vperm.slane %v775, 0
          %v777 = vadd.f32 %v767, %v776
          %v778 = vadd.f32 %v768, %v776
          %v779 = vadd.f32 %v769, %v776
          %v780 = vadd.f32 %v770, %v776
          %v781 = vadd.f32 %v771, %v776
          %v782 = vadd.f32 %v772, %v776
          %v783 = vadd.f32 %v773, %v776
          %v784 = vadd.f32 %v774, %v776
          %v785 = vmax.f32 %v777, 0.0
          %v786 = vmax.f32 %v778, 0.0
          %v787 = vmax.f32 %v779, 0.0
          %v788 = vmax.f32 %v780, 0.0
          %v789 = vmax.f32 %v781, 0.0
          %v790 = vmax.f32 %v782, 0.0
          %v791 = vmax.f32 %v783, 0.0
          %v792 = vmax.f32 %v784, 0.0
          %793 = vst [vmem:[%s366] sm:$0xff] %v785
          %794 = vst [vmem:[%s366 + $0x8] sm:$0xff] %v786
          %795 = vst [vmem:[%s366 + $0x10] sm:$0xff] %v787
          %796 = vst [vmem:[%s366 + $0x18] sm:$0xff] %v788
          %797 = vst [vmem:[%s366 + $0x20] sm:$0xff] %v789
          %798 = vst [vmem:[%s366 + $0x28] sm:$0xff] %v790
          %799 = vst [vmem:[%s366 + $0x30] sm:$0xff] %v791
          %800 = vst [vmem:[%s366 + $0x38] sm:$0xff] %v792
        $region87: #{tpu_custom_call.1} parent=47 // pred_fallthru
          _
        %s801 = sand.u32 %s204, 1
        %s802 = scalar_lea.sflag [#allocation6], %s801
        %s803 = sand.u32 %s204, 1
        %s804 = smul.addr %s803, 64
        %s805 = scalar_lea.vmem [#allocation12], %s804
        // Predicated region
        $region88: #{tpu_custom_call.1} parent=47 // pred_check
          %p806 = pneg %p214
        $region89: #{tpu_custom_call.1} parent=47 // pred_check_branch
          %808 = sbr.rel (%p806) target = $region91
        $region90: #{tpu_custom_call.1} parent=47 // pred_region
          %s809 = smul.u32 %s31, %s30
          %s810 = smul.u32 8, %s809
          %812 = vsyncadd %s802, 0
          %s813 = smul.addr %s810, 8
          %s814 = scalar_lea.hbm %s7, %s813
          %s815 = sshll.u32 %s805, 4
          %s816 = int_to_ptr.vmem [resolvable:$true] %s815
          %s817 = sshll.u32 %s814, 4
          %s818 = int_to_ptr.hbm [resolvable:$true] %s817
          %823 = dma.vmem_to_hbm [thread:$0]  %s816, 1024, %s818, %s802, 128, 128, 8
        $region91: #{tpu_custom_call.1} parent=47 // pred_fallthru
          _
      $region48: #{tpu_custom_call.1} parent=5 // pred_fallthru
        _
      %p824 = scmp.le.s32.totalorder 2, %s21
      // Predicated region
      $region92: #{tpu_custom_call.1} parent=5 // pred_check
        %p825 = pneg %p824
      $region93: #{tpu_custom_call.1} parent=5 // pred_check_branch
        %827 = sbr.rel (%p825) target = $region95
      $region94: #{tpu_custom_call.1} parent=5 // pred_region
        %s828 = ssub.s32 %s21, 2
        // Predicated region
        $region96: #{tpu_custom_call.1} parent=94 // pred_check
          %p829 = pneg %p220
        $region97: #{tpu_custom_call.1} parent=94 // pred_check_branch
          %831 = sbr.rel (%p829) target = $region99
        $region98: #{tpu_custom_call.1} parent=94 // pred_region
          %s832 = sand.u32 %s205, 1
          %s833 = scalar_lea.sflag [#allocation6], %s832
          %s834 = sand.u32 %s205, 1
          %s835 = smul.addr %s834, 64
          %s836 = scalar_lea.vmem [#allocation12], %s835
          %838 = dma.done %s833, 1024
        $region99: #{tpu_custom_call.1} parent=94 // pred_fallthru
          _
      $region95: #{tpu_custom_call.1} parent=5 // pred_fallthru
        _
    $region6: #{tpu_custom_call.1} parent=1 // loop_footer
      %s25 = sadd.s32 1, %s21
    $region7: #{tpu_custom_call.1} parent=1 // loop_footer_branch
      %20 = sbr.rel target = $region3
    $region8: #{tpu_custom_call.1} parent=1 // loop_exit
      _
    %839 = vsyncpa [#allocation5], 1
    %s840 = scalar_lea.sflag [#allocation5], 1
    %841 = vsyncpa %s840, 1
    %842 = vsyncpa [#allocation8], 1
    %843 = vsyncpa [#allocation11], 1
    %844 = vsyncpa [#allocation6], 1
    %s845 = scalar_lea.sflag [#allocation6], 1
    %846 = vsyncpa %s845, 1

</llo_original>
